<compile_context>
chip_gen: v7x
topology: tpu7x:2x2x1
jax: 0.10.0
libtpu: 0.0.40
codegen_flags: <defaults>
</compile_context>

<pallas_src>
import functools
import math

import jax
import jax.numpy as jnp
from jax import lax
from jax.experimental import pallas as pl
from jax.experimental.pallas import tpu as pltpu

EPS = 1e-5
VMEM_LIMIT = 32 * 1024 * 1024   # conservative; can be raised on v5e/v6e (128 MiB parts)
P_TILE_CAP = 1024               # pixel-tile rows for the stats / bottleneck kernels


def _round_up(x, m):
    return ((x + m - 1) // m) * m


def _pick_p_tile(P, cap=P_TILE_CAP):
    """Fixed tile (multiple of 16 for bf16 sublane packing); tail masked in-kernel."""
    if P >= cap:
        return cap
    return _round_up(P, 16)


# ----------------------------------------------------------------------------
# Kernel 1: per-channel sum / sum-of-squares of the (bf16) input features.
# Emits PER-TILE partials (no revisited blocks) -> grid axis is "parallel".
# Only used once, for the initial-x segment; all later segments get their stats
# from the conv3x3 kernel for free.
# ----------------------------------------------------------------------------
def _channel_stats_kernel(x_ref, sum_ref, sq_ref, *, P, tp):
    x = x_ref[...].astype(jnp.float32)
    if P % tp:                                     # static: mask only if a tail exists
        row = lax.broadcasted_iota(jnp.int32, (tp, 1), 0) + pl.program_id(0) * tp
        x = jnp.where(row < P, x, 0.0)
    sum_ref[0] = jnp.sum(x, axis=0, keepdims=True)
    sq_ref[0] = jnp.sum(x * x, axis=0, keepdims=True)


def channel_stats(x_flat, tp, P):
    _, C = x_flat.shape
    n_tiles = pl.cdiv(P, tp)
    kern = functools.partial(_channel_stats_kernel, P=P, tp=tp)
    s, q = pl.pallas_call(
        kern,
        out_shape=(jax.ShapeDtypeStruct((n_tiles, 1, C), jnp.float32),
                   jax.ShapeDtypeStruct((n_tiles, 1, C), jnp.float32)),
        grid=(n_tiles,),
        in_specs=[pl.BlockSpec((tp, C), lambda i: (i, 0))],
        out_specs=(pl.BlockSpec((1, 1, C), lambda i: (i, 0, 0)),
                   pl.BlockSpec((1, 1, C), lambda i: (i, 0, 0))),
        compiler_params=pltpu.CompilerParams(
            dimension_semantics=("parallel",),
            vmem_limit_bytes=VMEM_LIMIT),
    )(x_flat)
    return jnp.sum(s, axis=0), jnp.sum(q, axis=0)          # (1, C) each


# ----------------------------------------------------------------------------
# Kernel 2: fused  [per-segment BN1(apply) -> ReLU -> 1x1 conv slice]  summed over
# segments (equivalent to BN+ReLU+1x1 on the concatenated features, without ever
# materializing the concat in HBM).  Writes bf16 mid and per-tile BN2 partial
# stats of the bf16-rounded mid (so no extra pass over mid is needed).
# ----------------------------------------------------------------------------
def _bottleneck_kernel(*refs, n_seg, P, tp):
    seg_refs = refs[:n_seg]
    scale_refs = refs[n_seg:2 * n_seg]
    shift_refs = refs[2 * n_seg:3 * n_seg]
    w_refs = refs[3 * n_seg:4 * n_seg]
    mid_ref, sum_ref, sq_ref = refs[4 * n_seg:4 * n_seg + 3]

    if P % tp:
        row = lax.broadcasted_iota(jnp.int32, (tp, 1), 0) + pl.program_id(0) * tp
        valid = row < P
    else:
        valid = None

    y = None
    for j in range(n_seg):
        x = seg_refs[j][...].astype(jnp.float32)
        h = jnp.maximum(x * scale_refs[j][...] + shift_refs[j][...], 0.0)   # BN1+ReLU
        if valid is not None:
            h = jnp.where(valid, h, 0.0)            # zero OOB rows (stats + store safety)
        d = jnp.dot(h.astype(jnp.bfloat16), w_refs[j][...],
                    preferred_element_type=jnp.float32)                      # MXU
        y = d if y is None else y + d

    yb = y.astype(jnp.bfloat16)
    mid_ref[...] = yb
    yf = yb.astype(jnp.float32)                      # stats of the *stored* bf16 values
    sum_ref[0] = jnp.sum(yf, axis=0, keepdims=True)
    sq_ref[0] = jnp.sum(yf * yf, axis=0, keepdims=True)


def bottleneck_1x1(segs, scales, shifts, w_slices, tp, P):
    n_seg = len(segs)
    Cmid = w_slices[0].shape[1]
    n_tiles = pl.cdiv(P, tp)

    in_specs = []
    for seg in segs:
        in_specs.append(pl.BlockSpec((tp, seg.shape[-1]), lambda i: (i, 0)))
    for seg in segs:
        in_specs.append(pl.BlockSpec((1, seg.shape[-1]), lambda i: (0, 0)))
    for seg in segs:
        in_specs.append(pl.BlockSpec((1, seg.shape[-1]), lambda i: (0, 0)))
    for seg in segs:
        in_specs.append(pl.BlockSpec((seg.shape[-1], Cmid), lambda i: (0, 0)))

    kern = functools.partial(_bottleneck_kernel, n_seg=n_seg, P=P, tp=tp)
    return pl.pallas_call(
        kern,
        out_shape=(jax.ShapeDtypeStruct((P, Cmid), jnp.bfloat16),
                   jax.ShapeDtypeStruct((n_tiles, 1, Cmid), jnp.float32),
                   jax.ShapeDtypeStruct((n_tiles, 1, Cmid), jnp.float32)),
        grid=(n_tiles,),
        in_specs=in_specs,
        out_specs=(pl.BlockSpec((tp, Cmid), lambda i: (i, 0)),
                   pl.BlockSpec((1, 1, Cmid), lambda i: (i, 0, 0)),
                   pl.BlockSpec((1, 1, Cmid), lambda i: (i, 0, 0))),
        compiler_params=pltpu.CompilerParams(
            dimension_semantics=("parallel",),
            vmem_limit_bytes=VMEM_LIMIT),
    )(*segs, *scales, *shifts, *w_slices)


# ----------------------------------------------------------------------------
# Kernel 3: fused BN2(apply) -> ReLU -> 3x3 conv (stride 1, pad 1, no bias).
#   * zero halo built in a VMEM scratch; interior stored at a lane/sublane aligned
#     position (column 0), only the pad rows / right-pad columns are re-zeroed,
#   * ONE MXU matmul for all nine taps: (padded pixels, Cmid) x (Cmid, 9*G),
#   * taps combined by static flat-row shifts of the 9 column groups (wrong-row
#     wrap-around only ever lands in zero pad rows / discarded pad columns),
#   * output written lane-dense as (H, W*G) bf16; per-image sum/sumsq of the
#     bf16-rounded output emitted (cached BN1 stats for later layers).
# ----------------------------------------------------------------------------
def _conv3x3_kernel(mid_ref, s2_ref, b2_ref, w_ref, o_ref, ssum_ref, ssq_ref, xp_ref,
                    *, H, W, Wp, Cmid, G):
    s2 = s2_ref[...].reshape(1, 1, Cmid)
    b2 = b2_ref[...].reshape(1, 1, Cmid)
    z = jnp.maximum(mid_ref[0].astype(jnp.float32) * s2 + b2, 0.0)      # (H, W, Cmid)
    zb = z.astype(jnp.bfloat16)

    # Re-zero only the pad regions (correct under any 'parallel' core partitioning,
    # avoids a full-scratch store per image).  Interior rows are 2..H+1.
    zero_rows = jnp.zeros((2, Wp, Cmid), xp_ref.dtype)
    xp_ref[pl.ds(0, 2), :, :] = zero_rows
    xp_ref[pl.ds(H + 2, 2), :, :] = zero_rows
    xp_ref[pl.ds(2, H), pl.ds(W, Wp - W), :] = jnp.zeros((H, Wp - W, Cmid), xp_ref.dtype)
    xp_ref[pl.ds(2, H), pl.ds(0, W), :] = zb          # aligned interior store (col 0)

    R = (H + 4) * Wp
    xp_flat = xp_ref[...].reshape(R, Cmid)
    m = jnp.dot(xp_flat, w_ref[...], preferred_element_type=jnp.float32)   # (R, 9G)

    PW = H * Wp
    acc = None
    for dy in range(3):
        for dx in range(3):
            t = 3 * dy + dx
            s = (dy + 1) * Wp + dx - 1               # static flat offset of tap (dy, dx)
            contrib = m[s:s + PW, t * G:(t + 1) * G]
            acc = contrib if acc is None else acc + contrib

    out = acc.reshape(H, Wp, G)[:, :W, :]            # drop pad columns
    ob = out.astype(jnp.bfloat16)
    o_ref[0] = ob.reshape(H, W * G)                  # lane-dense output store

    of = ob.astype(jnp.float32)                      # stats of the *stored* bf16 values
    ssum_ref[0] = jnp.sum(jnp.sum(of, axis=1), axis=0, keepdims=True)           # (1, G)
    ssq_ref[0] = jnp.sum(jnp.sum(of * of, axis=1), axis=0, keepdims=True)


def conv3x3_bn_relu(mid_nhwc, scale2, shift2, w_flat_bf16):
    N, H, W, Cmid = mid_nhwc.shape
    G = w_flat_bf16.shape[1] // 9
    Wp = _round_up(W + 2, 16)                        # >= W+2, bf16-tile aligned width
    kern = functools.partial(_conv3x3_kernel, H=H, W=W, Wp=Wp, Cmid=Cmid, G=G)
    return pl.pallas_call(
        kern,
        out_shape=(jax.ShapeDtypeStruct((N, H, W * G), jnp.bfloat16),
                   jax.ShapeDtypeStruct((N, 1, G), jnp.float32),
                   jax.ShapeDtypeStruct((N, 1, G), jnp.float32)),
        grid=(N,),
        in_specs=[
            pl.BlockSpec((1, H, W, Cmid), lambda n: (n, 0, 0, 0)),
            pl.BlockSpec((1, Cmid), lambda n: (0, 0)),
            pl.BlockSpec((1, Cmid), lambda n: (0, 0)),
            pl.BlockSpec((Cmid, 9 * G), lambda n: (0, 0)),
        ],
        out_specs=(
            pl.BlockSpec((1, H, W * G), lambda n: (n, 0, 0)),
            pl.BlockSpec((1, 1, G), lambda n: (n, 0, 0)),
            pl.BlockSpec((1, 1, G), lambda n: (n, 0, 0)),
        ),
        scratch_shapes=[pltpu.VMEM((H + 4, Wp, Cmid), jnp.bfloat16)],
        compiler_params=pltpu.CompilerParams(
            dimension_semantics=("parallel",),        # megacore over images
            vmem_limit_bytes=VMEM_LIMIT),
    )(mid_nhwc, scale2.reshape(1, Cmid), shift2.reshape(1, Cmid), w_flat_bf16)


# ----------------------------------------------------------------------------
# Fold global batch statistics (sum, sumsq) into a per-channel affine:
#   BN(x) = x * scale + shift   with biased variance (training-mode normalization).
# ----------------------------------------------------------------------------
def _bn_affine(count, s, q, gamma, beta):
    mean = s / count
    var = jnp.maximum(q / count - mean * mean, 0.0)
    inv = lax.rsqrt(var + EPS)
    scale = gamma.reshape(1, -1) * inv
    shift = beta.reshape(1, -1) - mean * scale
    return scale, shift


# ----------------------------------------------------------------------------
# _DenseBlock forward (NCHW in / NCHW out).
# ----------------------------------------------------------------------------
def dense_block_forward(x_nchw, params):
    N, C0, H, W = x_nchw.shape
    P = N * H * W
    tp = _pick_p_tile(P)

    x = jnp.transpose(x_nchw, (0, 2, 3, 1)).reshape(P, C0).astype(jnp.bfloat16)
    segs = [x]                                       # bf16 (P, C_j) feature segments
    seg_stats = [channel_stats(x, tp, P)]            # cached per-segment (sum, sumsq)

    for p in params:
        # Per-segment BN1 affines / 1x1-weight slices (tiny host-side slicing).
        scales, shifts, w_slices = [], [], []
        off = 0
        for (ss, qq), seg in zip(seg_stats, segs):
            cj = seg.shape[-1]
            sc, sh = _bn_affine(P, ss, qq, p["bn1_w"][off:off + cj], p["bn1_b"][off:off + cj])
            scales.append(sc)
            shifts.append(sh)
            w_slices.append(p["conv1_w_io_bf16"][off:off + cj, :])
            off += cj

        mid, s2p, q2p = bottleneck_1x1(segs, scales, shifts, w_slices, tp, P)
        scale2, shift2 = _bn_affine(P, jnp.sum(s2p, axis=0), jnp.sum(q2p, axis=0),
                                    p["bn2_w"], p["bn2_b"])

        Cmid = mid.shape[-1]
        out_nhwg, sop, qop = conv3x3_bn_relu(mid.reshape(N, H, W, Cmid),
                                             scale2, shift2, p["conv2_w_flat_bf16"])
        G = p["conv2_w_flat_bf16"].shape[1] // 9
        segs.append(out_nhwg.reshape(P, G))                              # free reshape
        seg_stats.append((jnp.sum(sop, axis=0), jnp.sum(qop, axis=0)))   # (1, G) each

    y = jnp.concatenate([s.astype(jnp.float32) for s in segs], axis=-1)  # torch.cat(dim=1)
    return jnp.transpose(y.reshape(N, H, W, -1), (0, 3, 1, 2))           # back to NCHW


# ----------------------------------------------------------------------------
# Matched-precision reference (bf16 activation storage, f32 stats/accumulation),
# mirroring the kernel's exact policy; used for the tight check.
# ----------------------------------------------------------------------------
def reference_forward_matched(x_nchw, params):
    N, C0, H, W = x_nchw.shape
    P = N * H * W
    x = jnp.transpose(x_nchw, (0, 2, 3, 1)).reshape(P, C0).astype(jnp.bfloat16)
    segs = [x]
    for p in params:
        cat = jnp.concatenate([s.astype(jnp.float32) for s in segs], axis=-1)
        s1 = jnp.sum(cat, axis=0, keepdims=True)
        q1 = jnp.sum(cat * cat, axis=0, keepdims=True)
        sc1, sh1 = _bn_affine(P, s1, q1, p["bn1_w"], p["bn1_b"])
        h = jnp.maximum(cat * sc1 + sh1, 0.0).astype(jnp.bfloat16)
        mid = jnp.dot(h, p["conv1_w_io_bf16"], preferred_element_type=jnp.float32)
        midf = mid.astype(jnp.bfloat16).astype(jnp.float32)
        s2 = jnp.sum(midf, axis=0, keepdims=True)
        q2 = jnp.sum(midf * midf, axis=0, keepdims=True)
        sc2, sh2 = _bn_affine(P, s2, q2, p["bn2_w"], p["bn2_b"])
        z = jnp.maximum(midf * sc2 + sh2, 0.0).astype(jnp.bfloat16)
        out = lax.conv_general_dilated(
            z.reshape(N, H, W, -1), p["conv2_w_oihw"].astype(jnp.bfloat16),
            (1, 1), ((1, 1), (1, 1)),
            dimension_numbers=("NHWC", "OIHW", "NHWC"),
            preferred_element_type=jnp.float32)
        segs.append(out.reshape(P, -1).astype(jnp.bfloat16))
    y = jnp.concatenate([s.astype(jnp.float32) for s in segs], axis=-1)
    return jnp.transpose(y.reshape(N, H, W, -1), (0, 3, 1, 2))


# Full-float32 reference (loose sanity bound).
def reference_forward_f32(x, params):
    def bn(t, w, b):
        m = jnp.mean(t, axis=(0, 2, 3), keepdims=True)
        v = jnp.mean(jnp.square(t - m), axis=(0, 2, 3), keepdims=True)
        return (t - m) / jnp.sqrt(v + EPS) * w.reshape(1, -1, 1, 1) + b.reshape(1, -1, 1, 1)

    outputs = [x]
    for p in params:
        cat = jnp.concatenate(outputs, axis=1)
        h = jax.nn.relu(bn(cat, p["bn1_w"], p["bn1_b"]))
        y = lax.conv_general_dilated(h, p["conv1_w_oihw"], (1, 1), "VALID",
                                     dimension_numbers=("NCHW", "OIHW", "NCHW"))
        z = jax.nn.relu(bn(y, p["bn2_w"], p["bn2_b"]))
        out = lax.conv_general_dilated(z, p["conv2_w_oihw"], (1, 1), ((1, 1), (1, 1)),
                                       dimension_numbers=("NCHW", "OIHW", "NCHW"))
        outputs.append(out)
    return jnp.concatenate(outputs, axis=1)


# ----------------------------------------------------------------------------
# Deterministic synthetic parameters (shapes / init as in the PyTorch __init__).
# ----------------------------------------------------------------------------
def make_params(key, num_layers, num_input_features, bn_size, growth_rate):
    params = []
    for i in range(num_layers):
        cin = num_input_features + i * growth_rate
        cmid = bn_size * growth_rate
        key, k1, k2, k3 = jax.random.split(key, 4)
        bn1_w = jax.random.uniform(k1, (cin,), jnp.float32)              # norm_weight ~ U(0,1)
        bn1_b = jnp.zeros((cin,), jnp.float32)                           # norm_bias = 0
        stdv = 1.0 / math.sqrt(cin)
        conv1_w = jax.random.uniform(k2, (cmid, cin, 1, 1), jnp.float32, -stdv, stdv)
        bn2_w = jnp.ones((cmid,), jnp.float32)
        bn2_b = jnp.zeros((cmid,), jnp.float32)
        k33 = 1.0 / math.sqrt(cmid * 9)
        conv2_w = jax.random.uniform(k3, (growth_rate, cmid, 3, 3), jnp.float32, -k33, k33)
        # (Cmid, 9*G): column group t = 3*dy+dx holds the (Cmid, G) tap weight W[dy, dx].
        conv2_w_flat = jnp.transpose(conv2_w, (1, 2, 3, 0)).reshape(cmid, 9 * growth_rate)
        params.append(dict(
            bn1_w=bn1_w, bn1_b=bn1_b,
            conv1_w_oihw=conv1_w,
            conv1_w_io_bf16=conv1_w[:, :, 0, 0].T.astype(jnp.bfloat16),   # (Cin, Cmid)
            bn2_w=bn2_w, bn2_b=bn2_b,
            conv2_w_oihw=conv2_w,
            conv2_w_flat_bf16=conv2_w_flat.astype(jnp.bfloat16),
        ))
    return params


if __name__ == "__main__":
    num_layers = 3
    num_input_features = 8
    growth_rate = 4
    bn_size = 2
    N, H, W = 2, 8, 8

    key = jax.random.PRNGKey(0)
    key, kx, kp = jax.random.split(key, 3)
    x = jax.random.normal(kx, (N, num_input_features, H, W), jnp.float32)   # NCHW
    params = make_params(kp, num_layers, num_input_features, bn_size, growth_rate)

    out = jax.block_until_ready(dense_block_forward(x, params))
    expected_c = num_input_features + growth_rate * num_layers
    assert out.shape == (N, expected_c, H, W), out.shape

    # Tight check against a reference with the same precision policy
    # (bf16 activation storage / MXU operands, f32 stats & accumulation).
    ref_m = jax.block_until_ready(reference_forward_matched(x, params))
    err_m = jnp.max(jnp.abs(out - ref_m))
    assert jnp.allclose(out, ref_m, atol=2e-2, rtol=2e-2), \
        f"max abs err vs matched-precision ref {err_m}"

    # Loose sanity bound against the full-f32 reference.
    ref_f = jax.block_until_ready(reference_forward_f32(x, params))
    err_f = jnp.max(jnp.abs(out - ref_f))
    assert jnp.allclose(out, ref_f, atol=0.25, rtol=0.25), \
        f"max abs err vs f32 ref {err_f}"

    print("KERNEL_OK")
</pallas_src>

<mosaic_0001>
module attributes {stable_mosaic.version = 11 : i64} {
  func.func @_channel_stats_kernel(%arg0: i32, %arg1: memref<128x8xbf16, #tpu.memory_space<vmem>>, %arg2: memref<1x1x8xf32, #tpu.memory_space<vmem>>, %arg3: memref<1x1x8xf32, #tpu.memory_space<vmem>>) attributes {dimension_semantics = [#tpu.dimension_semantics<parallel>], iteration_bounds = array<i64: 1>, scalar_prefetch = 0 : i64, scratch_operands = 0 : i64, tpu.core_type = #tpu.core_type<tc>, window_params = [{transform_indices = @transform_0, window_bounds = array<i64: 128, 8>}, {transform_indices = @transform_1, window_bounds = array<i64: 1, 1, 8>}, {transform_indices = @transform_2, window_bounds = array<i64: 1, 1, 8>}]} {
    %c0 = arith.constant 0 : index
    %c0_0 = arith.constant 0 : index
    %0 = vector.load %arg1[%c0, %c0_0] : memref<128x8xbf16, #tpu.memory_space<vmem>>, vector<128x8xbf16>
    %1 = arith.extf %0 : vector<128x8xbf16> to vector<128x8xf32>
    %cst = arith.constant dense<0.000000e+00> : vector<8xf32>
    %2 = vector.multi_reduction <add>, %1, %cst [0] : vector<128x8xf32> to vector<8xf32>
    %3 = vector.shape_cast %2 : vector<8xf32> to vector<1x8xf32>
    %c0_1 = arith.constant 0 : index
    %c0_2 = arith.constant 0 : index
    %c0_3 = arith.constant 0 : index
    %4 = vector.load %arg2[%c0_1, %c0_2, %c0_3] : memref<1x1x8xf32, #tpu.memory_space<vmem>>, vector<1x1x8xf32>
    %5 = vector.shape_cast %4 : vector<1x1x8xf32> to vector<1x8xf32>
    %6 = vector.shape_cast %3 : vector<1x8xf32> to vector<1x1x8xf32>
    tpu.vector_store %arg2[%c0_1, %c0_2, %c0_3], %6 {strides = array<i32>} : memref<1x1x8xf32, #tpu.memory_space<vmem>>, vector<1x1x8xf32>,
    %7 = arith.mulf %1, %1 : vector<128x8xf32>
    %cst_4 = arith.constant dense<0.000000e+00> : vector<8xf32>
    %8 = vector.multi_reduction <add>, %7, %cst_4 [0] : vector<128x8xf32> to vector<8xf32>
    %9 = vector.shape_cast %8 : vector<8xf32> to vector<1x8xf32>
    %c0_5 = arith.constant 0 : index
    %c0_6 = arith.constant 0 : index
    %c0_7 = arith.constant 0 : index
    %10 = vector.load %arg3[%c0_5, %c0_6, %c0_7] : memref<1x1x8xf32, #tpu.memory_space<vmem>>, vector<1x1x8xf32>
    %11 = vector.shape_cast %10 : vector<1x1x8xf32> to vector<1x8xf32>
    %12 = vector.shape_cast %9 : vector<1x8xf32> to vector<1x1x8xf32>
    tpu.vector_store %arg3[%c0_5, %c0_6, %c0_7], %12 {strides = array<i32>} : memref<1x1x8xf32, #tpu.memory_space<vmem>>, vector<1x1x8xf32>,
    return
  }
  func.func @transform_0(%arg0: i32) -> (i32, i32) {
    %c0_i32 = arith.constant 0 : i32
    %c0_i32_0 = arith.constant 0 : i32
    return %arg0, %c0_i32 : i32, i32
  }
  func.func @transform_1(%arg0: i32) -> (i32, i32, i32) {
    %c0_i32 = arith.constant 0 : i32
    %c0_i32_0 = arith.constant 0 : i32
    %c0_i32_1 = arith.constant 0 : i32
    return %arg0, %c0_i32, %c0_i32_0 : i32, i32, i32
  }
  func.func @transform_2(%arg0: i32) -> (i32, i32, i32) {
    %c0_i32 = arith.constant 0 : i32
    %c0_i32_0 = arith.constant 0 : i32
    %c0_i32_1 = arith.constant 0 : i32
    return %arg0, %c0_i32, %c0_i32_0 : i32, i32, i32
  }
}

</mosaic_0001>

<llo_original>
// kernel: tpu_custom_call.1
$region0: #{tpu_custom_call.1}
  #allocation0 [shape = 'u32[]', space=smem, size = 0x4, offset = 0x4, fixed_abs, tag = 'smem constant byte address 0x4 - core index']
  #allocation1 [shape = 'u32[144,128]{1,0:T(1,128)}', space=vmem, size = 0x12000, scoped, tag = 'internal scratch']
  %s0 = inlined_call_operand.vmem [shape: bf16[128,8], index: 0, kind: input, shape index: {}]
  %s1 = inlined_call_operand.hbm [shape: f32[1,1,8], index: 1, kind: output, shape index: {0}]
  %s2 = inlined_call_operand.hbm [shape: f32[1,1,8], index: 2, kind: output, shape index: {1}]
  %3 = xla_tuple %s1, %s2
  %s4 = sld [smem:[#allocation0]]
  $region22: #{tpu_custom_call.1} parent=0
    _
  %s6 = ssub.s32 1, %s4
  %s7 = scalar_select 0, %s6, %s4
  $region1: #{tpu_custom_call.1} parent=0
    #allocation2 [shape = 'u8[512]{0}', space=vmem, size = 0x400, scoped, tag = 'output window, operand 0, single buffered']
    #allocation3 [shape = 's32[1]{0}', space=sflag, size = 0x4, scoped, tag = 'scoped memory for tpu_custom_call.1']
    #allocation4 [shape = 'u8[512]{0}', space=vmem, size = 0x400, scoped, tag = 'output window, operand 1, single buffered']
    #allocation5 [shape = 's32[1]{0}', space=sflag, size = 0x4, scoped, tag = 'scoped memory for tpu_custom_call.1']
    %8 = vsyncpa [#allocation3], 0
    %9 = vsyncpa [#allocation5], 0
    // Predicated region
    $region2: #{tpu_custom_call.1} parent=1 // pred_check
      _
    $region3: #{tpu_custom_call.1} parent=1 // pred_check_branch
      %11 = sbr.rel (0) target = $region5
    $region4: #{tpu_custom_call.1} parent=1 // pred_region
      _
    $region5: #{tpu_custom_call.1} parent=1 // pred_fallthru
      _
    %v12 = vld [vmem:[%s0] sm:$0xf]
    %v13 = vld [vmem:[%s0 + $0x4] sm:$0xf]
    %v14 = vld [vmem:[%s0 + $0x8] sm:$0xf]
    %v15 = vld [vmem:[%s0 + $0xc] sm:$0xf]
    %v16 = vld [vmem:[%s0 + $0x10] sm:$0xf]
    %v17 = vld [vmem:[%s0 + $0x14] sm:$0xf]
    %v18 = vld [vmem:[%s0 + $0x18] sm:$0xf]
    %v19 = vld [vmem:[%s0 + $0x1c] sm:$0xf]
    %v20 = vld [vmem:[%s0 + $0x20] sm:$0xf]
    %v21 = vld [vmem:[%s0 + $0x24] sm:$0xf]
    %v22 = vld [vmem:[%s0 + $0x28] sm:$0xf]
    %v23 = vld [vmem:[%s0 + $0x2c] sm:$0xf]
    %v24 = vld [vmem:[%s0 + $0x30] sm:$0xf]
    %v25 = vld [vmem:[%s0 + $0x34] sm:$0xf]
    %v26 = vld [vmem:[%s0 + $0x38] sm:$0xf]
    %v27 = vld [vmem:[%s0 + $0x3c] sm:$0xf]
    %v28 = vunpack.c.l.bf16 %v12
    %v29 = vunpack.c.l.bf16 %v13
    %v30 = vunpack.c.l.bf16 %v14
    %v31 = vunpack.c.l.bf16 %v15
    %v32 = vunpack.c.l.bf16 %v16
    %v33 = vunpack.c.l.bf16 %v17
    %v34 = vunpack.c.l.bf16 %v18
    %v35 = vunpack.c.l.bf16 %v19
    %v36 = vunpack.c.l.bf16 %v20
    %v37 = vunpack.c.l.bf16 %v21
    %v38 = vunpack.c.l.bf16 %v22
    %v39 = vunpack.c.l.bf16 %v23
    %v40 = vunpack.c.l.bf16 %v24
    %v41 = vunpack.c.l.bf16 %v25
    %v42 = vunpack.c.l.bf16 %v26
    %v43 = vunpack.c.l.bf16 %v27
    %vm44 = vcmask 64512
    %v45 = vsel %vm44, %v28, 0.0
    %v46 = vsel %vm44, %v29, 0.0
    %v47 = vadd.f32 %v45, %v46
    %v48 = vsel %vm44, %v30, 0.0
    %v49 = vadd.f32 %v47, %v48
    %v50 = vsel %vm44, %v31, 0.0
    %v51 = vadd.f32 %v49, %v50
    %v52 = vsel %vm44, %v32, 0.0
    %v53 = vadd.f32 %v51, %v52
    %v54 = vsel %vm44, %v33, 0.0
    %v55 = vadd.f32 %v53, %v54
    %v56 = vsel %vm44, %v34, 0.0
    %v57 = vadd.f32 %v55, %v56
    %v58 = vsel %vm44, %v35, 0.0
    %v59 = vadd.f32 %v57, %v58
    %v60 = vsel %vm44, %v36, 0.0
    %v61 = vadd.f32 %v59, %v60
    %v62 = vsel %vm44, %v37, 0.0
    %v63 = vadd.f32 %v61, %v62
    %v64 = vsel %vm44, %v38, 0.0
    %v65 = vadd.f32 %v63, %v64
    %v66 = vsel %vm44, %v39, 0.0
    %v67 = vadd.f32 %v65, %v66
    %v68 = vsel %vm44, %v40, 0.0
    %v69 = vadd.f32 %v67, %v68
    %v70 = vsel %vm44, %v41, 0.0
    %v71 = vadd.f32 %v69, %v70
    %v72 = vsel %vm44, %v42, 0.0
    %v73 = vadd.f32 %v71, %v72
    %v74 = vsel %vm44, %v43, 0.0
    %v75 = vadd.f32 %v73, %v74
    %v76 = vrot.slane %v75, 4
    %v77 = vadd.f32 %v75, %v76
    %v78 = vrot.slane %v77, 2
    %v79 = vadd.f32 %v77, %v78
    %v80 = vrot.slane %v79, 1
    %v81 = vadd.f32 %v79, %v80
    %vm82 = vcmask 57344
    %83 = vst.msk [vmem:[#allocation2] sm:$0x1] %vm82, %v81
    %v84 = vmul.f32 %v28, %v28
    %v85 = vmul.f32 %v29, %v29
    %v86 = vmul.f32 %v30, %v30
    %v87 = vmul.f32 %v31, %v31
    %v88 = vmul.f32 %v32, %v32
    %v89 = vmul.f32 %v33, %v33
    %v90 = vmul.f32 %v34, %v34
    %v91 = vmul.f32 %v35, %v35
    %v92 = vmul.f32 %v36, %v36
    %v93 = vmul.f32 %v37, %v37
    %v94 = vmul.f32 %v38, %v38
    %v95 = vmul.f32 %v39, %v39
    %v96 = vmul.f32 %v40, %v40
    %v97 = vmul.f32 %v41, %v41
    %v98 = vmul.f32 %v42, %v42
    %v99 = vmul.f32 %v43, %v43
    %v100 = vsel %vm44, %v84, 0.0
    %v101 = vsel %vm44, %v85, 0.0
    %v102 = vadd.f32 %v100, %v101
    %v103 = vsel %vm44, %v86, 0.0
    %v104 = vadd.f32 %v102, %v103
    %v105 = vsel %vm44, %v87, 0.0
    %v106 = vadd.f32 %v104, %v105
    %v107 = vsel %vm44, %v88, 0.0
    %v108 = vadd.f32 %v106, %v107
    %v109 = vsel %vm44, %v89, 0.0
    %v110 = vadd.f32 %v108, %v109
    %v111 = vsel %vm44, %v90, 0.0
    %v112 = vadd.f32 %v110, %v111
    %v113 = vsel %vm44, %v91, 0.0
    %v114 = vadd.f32 %v112, %v113
    %v115 = vsel %vm44, %v92, 0.0
    %v116 = vadd.f32 %v114, %v115
    %v117 = vsel %vm44, %v93, 0.0
    %v118 = vadd.f32 %v116, %v117
    %v119 = vsel %vm44, %v94, 0.0
    %v120 = vadd.f32 %v118, %v119
    %v121 = vsel %vm44, %v95, 0.0
    %v122 = vadd.f32 %v120, %v121
    %v123 = vsel %vm44, %v96, 0.0
    %v124 = vadd.f32 %v122, %v123
    %v125 = vsel %vm44, %v97, 0.0
    %v126 = vadd.f32 %v124, %v125
    %v127 = vsel %vm44, %v98, 0.0
    %v128 = vadd.f32 %v126, %v127
    %v129 = vsel %vm44, %v99, 0.0
    %v130 = vadd.f32 %v128, %v129
    %v131 = vrot.slane %v130, 4
    %v132 = vadd.f32 %v130, %v131
    %v133 = vrot.slane %v132, 2
    %v134 = vadd.f32 %v132, %v133
    %v135 = vrot.slane %v134, 1
    %v136 = vadd.f32 %v134, %v135
    %137 = vst.msk [vmem:[#allocation4] sm:$0x1] %vm82, %v136
    // Predicated region
    $region6: #{tpu_custom_call.1} parent=1 // pred_check
      _
    $region7: #{tpu_custom_call.1} parent=1 // pred_check_branch
      %139 = sbr.rel (0) target = $region9
    $region8: #{tpu_custom_call.1} parent=1 // pred_region
      %s141 = ssub.s32 16, 16
      %142 = vsyncadd [#allocation3], %s141
      %s144 = sshll.u32 [#allocation2], 4
      %s145 = int_to_ptr.vmem [resolvable:$true] %s144
      %147 = dma.vmem_to_hbm [thread:$0]  %s145, 16, %s1, [#allocation3]
    $region9: #{tpu_custom_call.1} parent=1 // pred_fallthru
      _
    // Predicated region
    $region10: #{tpu_custom_call.1} parent=1 // pred_check
      _
    $region11: #{tpu_custom_call.1} parent=1 // pred_check_branch
      %149 = sbr.rel (0) target = $region13
    $region12: #{tpu_custom_call.1} parent=1 // pred_region
      %s151 = ssub.s32 16, 16
      %152 = vsyncadd [#allocation5], %s151
      %s154 = sshll.u32 [#allocation4], 4
      %s155 = int_to_ptr.vmem [resolvable:$true] %s154
      %157 = dma.vmem_to_hbm [thread:$0]  %s155, 16, %s2, [#allocation5]
    $region13: #{tpu_custom_call.1} parent=1 // pred_fallthru
      _
    // Predicated region
    $region14: #{tpu_custom_call.1} parent=1 // pred_check
      _
    $region15: #{tpu_custom_call.1} parent=1 // pred_check_branch
      %159 = sbr.rel (0) target = $region17
    $region16: #{tpu_custom_call.1} parent=1 // pred_region
      %160 = dma.done [#allocation3], 16
    $region17: #{tpu_custom_call.1} parent=1 // pred_fallthru
      _
    // Predicated region
    $region18: #{tpu_custom_call.1} parent=1 // pred_check
      _
    $region19: #{tpu_custom_call.1} parent=1 // pred_check_branch
      %162 = sbr.rel (0) target = $region21
    $region20: #{tpu_custom_call.1} parent=1 // pred_region
      %163 = dma.done [#allocation5], 16
    $region21: #{tpu_custom_call.1} parent=1 // pred_fallthru
      _
    %164 = vsyncpa [#allocation3], 1
    %165 = vsyncpa [#allocation5], 1

</llo_original>
